<compile_context>
chip_gen: v7x
topology: tpu7x:2x2x1
jax: 0.10.0
libtpu: 0.0.40
codegen_flags: <defaults>
</compile_context>

<pallas_src>
import jax
import jax.numpy as jnp
from jax import lax
from jax.experimental import pallas as pl
from jax.experimental.pallas import tpu as pltpu

# Module hyperparameters (match SSGConv defaults).
K = 5
ALPHA = 0.1
ADD_SELF_LOOPS = True
NORMALIZE = True


def ssg_conv_kernel(adj_hbm, x_ref, w_ref, b_ref, out_ref, adj_vmem, dma_sem):
    """Whole-graph SSGConv forward: folded gcn_norm + K bf16 MXU hops + pre-applied linear."""
    # Kick off the (large) adjacency DMA first and overlap it with the feature projection.
    adj_copy = pltpu.make_async_copy(adj_hbm, adj_vmem, dma_sem)
    adj_copy.start()

    # Linear BEFORE propagation: out = alpha*(xW) + coef * sum_k A_hat^k (xW) + b.
    x = x_ref[...].astype(jnp.float32)
    w = w_ref[...].astype(jnp.float32)
    xp = jnp.dot(x, w, preferred_element_type=jnp.float32)            # (N, Fp) f32

    adj_copy.wait()
    adj = adj_vmem[...]                                                # (N, N) bf16 raw 0/1 A

    # Folded normalization: only an (N, 1) scale vector, never a modified copy of A.
    deg = jnp.sum(adj.astype(jnp.float32), axis=-1, keepdims=True)     # (N, 1) row degrees
    if ADD_SELF_LOOPS:
        deg = deg + 1.0
    if NORMALIZE:
        s = jnp.where(deg > 0, lax.rsqrt(deg), 0.0)                    # deg^-0.5, inf -> 0
    else:
        s = jnp.ones_like(deg)

    h = xp
    acc = jnp.zeros_like(xp)
    for _ in range(K):                                                 # small static K: unrolled
        z = s * h                                                      # D^-1/2 h        (f32)
        p = jnp.dot(adj, z.astype(jnp.bfloat16),                       # A @ (D^-1/2 h)  bf16 MXU,
                    preferred_element_type=jnp.float32)                #                 f32 acc
        if ADD_SELF_LOOPS:
            p = p + z                                                  # + I (D^-1/2 h)  exact f32
        h = s * p                                                      # D^-1/2 (...)
        acc = acc + h

    coef = (1.0 - ALPHA) / K
    y = ALPHA * xp + coef * acc + b_ref[...].astype(jnp.float32)
    out_ref[...] = y.astype(out_ref.dtype)


def _round_up(v, m):
    return (v + m - 1) // m * m


@jax.jit
def ssg_conv(adj, x, weight_t, bias):
    """adj: [N, N] dense 0/1 adjacency, x: [N, F_in], weight_t: [F_in, F_out], bias: [1, F_out]."""
    n, f_in = x.shape
    f_out = weight_t.shape[1]
    f_pad = _round_up(max(f_out, 1), 128)

    # Narrow adjacency storage (exact for binary graphs); keep weighted graphs in f32 if needed.
    adj_bf16 = adj.astype(jnp.bfloat16)

    # Lane-dense output: pad F_out up to a multiple of 128, slice after the call.
    w_p = jnp.pad(weight_t, ((0, 0), (0, f_pad - f_out)))
    b_p = jnp.pad(bias, ((0, 0), (0, f_pad - f_out)))

    vmem_bytes = (
        2 * n * n                        # resident bf16 adjacency (single-buffered scratch)
        + 4 * n * (f_in + 6 * f_pad)     # x + projected features / hop state / output
        + 4 * (f_in * f_pad + f_pad)     # weight + bias
        + (4 << 20)                      # headroom for compiler temporaries
    )
    # Cap below the smallest physical VMEM across targets (v7x: 64 MiB per TensorCore).
    vmem_limit = int(min(48 * 2**20, max(32 * 2**20, vmem_bytes)))

    out = pl.pallas_call(
        ssg_conv_kernel,
        out_shape=jax.ShapeDtypeStruct((n, f_pad), x.dtype),
        in_specs=[
            pl.BlockSpec(memory_space=pl.ANY),            # A stays in HBM; manual single-buffer DMA
            pl.BlockSpec((n, f_in), lambda: (0, 0)),
            pl.BlockSpec((f_in, f_pad), lambda: (0, 0)),
            pl.BlockSpec((1, f_pad), lambda: (0, 0)),
        ],
        out_specs=pl.BlockSpec((n, f_pad), lambda: (0, 0)),
        scratch_shapes=[
            pltpu.VMEM((n, n), jnp.bfloat16),             # resident adjacency
            pltpu.SemaphoreType.DMA(()),
        ],
        compiler_params=pltpu.CompilerParams(vmem_limit_bytes=vmem_limit),
    )(adj_bf16, x, w_p, b_p)
    return out[:, :f_out]


def reference(adj, x, weight_t, bias):
    """Pure-JAX f32 reference of the same forward."""
    n = adj.shape[0]
    a = adj + jnp.eye(n, dtype=adj.dtype) if ADD_SELF_LOOPS else adj
    if NORMALIZE:
        deg = a.sum(-1)
        s = jnp.where(deg > 0, deg ** -0.5, 0.0)
        a = s[None, :] * a * s[:, None]
    x_out = ALPHA * x
    h = x
    for _ in range(K):
        h = a @ h
        x_out = x_out + (1.0 - ALPHA) / K * h
    return x_out @ weight_t + bias


if __name__ == "__main__":
    key = jax.random.PRNGKey(0)
    k_adj, k_x, k_w = jax.random.split(key, 3)

    N, F_IN, F_OUT = 128, 32, 16

    # Random symmetric binary adjacency (no self-loops initially).
    a = (jax.random.uniform(k_adj, (N, N)) < 0.05).astype(jnp.float32)
    adj = jnp.clip(a + a.T, 0.0, 1.0)
    adj = adj * (1.0 - jnp.eye(N, dtype=jnp.float32))

    x = jax.random.normal(k_x, (N, F_IN), dtype=jnp.float32)

    # Glorot-uniform weight (PyG Linear 'glorot'), stored as [F_in, F_out]; zero bias.
    limit = (6.0 / (F_IN + F_OUT)) ** 0.5
    weight_t = jax.random.uniform(k_w, (F_IN, F_OUT), minval=-limit, maxval=limit,
                                  dtype=jnp.float32)
    bias = jnp.zeros((1, F_OUT), dtype=jnp.float32)

    out = ssg_conv(adj, x, weight_t, bias)
    out = jax.block_until_ready(out)

    ref = reference(adj, x, weight_t, bias)
    assert out.shape == (N, F_OUT)
    # Tolerance covers bf16 rounding of the per-hop matmul inputs (adjacency itself is exact in
    # bf16; the accumulator, self-loop term and linear layer are f32).
    assert jnp.allclose(out, ref, atol=5e-2, rtol=5e-2), \
        f"max abs err {jnp.max(jnp.abs(out - ref))}"

    print("KERNEL_OK")
</pallas_src>

<mosaic_0001>
module attributes {stable_mosaic.version = 11 : i64} {
  func.func @ssg_conv_kernel(%arg0: memref<128x128xbf16, #tpu.memory_space<any>>, %arg1: memref<128x32xf32, #tpu.memory_space<vmem>>, %arg2: memref<32x128xf32, #tpu.memory_space<vmem>>, %arg3: memref<1x128xf32, #tpu.memory_space<vmem>>, %arg4: memref<128x128xf32, #tpu.memory_space<vmem>>, %arg5: memref<128x128xbf16, #tpu.memory_space<vmem>>, %arg6: memref<!tpu.dma_semaphore, #tpu.memory_space<semaphore_mem>>) attributes {dimension_semantics = [], scalar_prefetch = 0 : i64, scratch_operands = 2 : i64, tpu.core_type = #tpu.core_type<tc>} {
    tpu.enqueue_dma source(%arg0 : memref<128x128xbf16, #tpu.memory_space<any>>) target(%arg5 : memref<128x128xbf16, #tpu.memory_space<vmem>>) target_semaphore(%arg6 : memref<!tpu.dma_semaphore, #tpu.memory_space<semaphore_mem>>)
    %c0 = arith.constant 0 : index
    %c0_0 = arith.constant 0 : index
    %0 = vector.load %arg1[%c0, %c0_0] : memref<128x32xf32, #tpu.memory_space<vmem>>, vector<128x32xf32>
    %c0_1 = arith.constant 0 : index
    %c0_2 = arith.constant 0 : index
    %1 = vector.load %arg2[%c0_1, %c0_2] : memref<32x128xf32, #tpu.memory_space<vmem>>, vector<32x128xf32>
    %cst = arith.constant dense<0.000000e+00> : vector<128x128xf32>
    %2 = tpu.matmul %0, %1, %cst {dimension_numbers = #tpu.dot_dimension_numbers<[1], [0], [0], [1], [0, 0, 1, 1], [], []>} : vector<128x32xf32>, vector<32x128xf32>, vector<128x128xf32> -> vector<128x128xf32>
    tpu.wait_dma2 semaphore(%arg6 : memref<!tpu.dma_semaphore, #tpu.memory_space<semaphore_mem>>) src(%arg0 : memref<128x128xbf16, #tpu.memory_space<any>>) dst(%arg5 : memref<128x128xbf16, #tpu.memory_space<vmem>>)
    %c0_3 = arith.constant 0 : index
    %c0_4 = arith.constant 0 : index
    %3 = vector.load %arg5[%c0_3, %c0_4] : memref<128x128xbf16, #tpu.memory_space<vmem>>, vector<128x128xbf16>
    %4 = arith.extf %3 : vector<128x128xbf16> to vector<128x128xf32>
    %cst_5 = arith.constant dense<0.000000e+00> : vector<128xf32>
    %5 = vector.multi_reduction <add>, %4, %cst_5 [1] : vector<128x128xf32> to vector<128xf32>
    %6 = vector.shape_cast %5 : vector<128xf32> to vector<128x1xf32>
    %cst_6 = arith.constant 1.000000e+00 : f32
    %7 = vector.broadcast %cst_6 : f32 to vector<128x1xf32>
    %8 = arith.addf %6, %7 : vector<128x1xf32>
    %cst_7 = arith.constant 0.000000e+00 : f32
    %9 = vector.broadcast %cst_7 : f32 to vector<128x1xf32>
    %10 = arith.cmpf ogt, %8, %9 : vector<128x1xf32>
    %11 = math.rsqrt %8 : vector<128x1xf32>
    %cst_8 = arith.constant 0.000000e+00 : f32
    %12 = vector.broadcast %cst_8 : f32 to vector<128x1xf32>
    %13 = arith.select %10, %11, %12 : vector<128x1xi1>, vector<128x1xf32>
    %cst_9 = arith.constant 0.000000e+00 : f32
    %14 = vector.broadcast %cst_9 : f32 to vector<128x128xf32>
    %15 = vector.broadcast %13 : vector<128x1xf32> to vector<128x128xf32>
    %16 = arith.mulf %15, %2 : vector<128x128xf32>
    %17 = arith.truncf %16 : vector<128x128xf32> to vector<128x128xbf16>
    %cst_10 = arith.constant dense<0.000000e+00> : vector<128x128xf32>
    %18 = tpu.matmul %3, %17, %cst_10 {dimension_numbers = #tpu.dot_dimension_numbers<[1], [0], [0], [1], [0, 0, 1, 1], [], []>} : vector<128x128xbf16>, vector<128x128xbf16>, vector<128x128xf32> -> vector<128x128xf32>
    %19 = arith.addf %18, %16 : vector<128x128xf32>
    %20 = vector.broadcast %13 : vector<128x1xf32> to vector<128x128xf32>
    %21 = arith.mulf %20, %19 : vector<128x128xf32>
    %22 = arith.addf %14, %21 : vector<128x128xf32>
    %23 = vector.broadcast %13 : vector<128x1xf32> to vector<128x128xf32>
    %24 = arith.mulf %23, %21 : vector<128x128xf32>
    %25 = arith.truncf %24 : vector<128x128xf32> to vector<128x128xbf16>
    %cst_11 = arith.constant dense<0.000000e+00> : vector<128x128xf32>
    %26 = tpu.matmul %3, %25, %cst_11 {dimension_numbers = #tpu.dot_dimension_numbers<[1], [0], [0], [1], [0, 0, 1, 1], [], []>} : vector<128x128xbf16>, vector<128x128xbf16>, vector<128x128xf32> -> vector<128x128xf32>
    %27 = arith.addf %26, %24 : vector<128x128xf32>
    %28 = vector.broadcast %13 : vector<128x1xf32> to vector<128x128xf32>
    %29 = arith.mulf %28, %27 : vector<128x128xf32>
    %30 = arith.addf %22, %29 : vector<128x128xf32>
    %31 = vector.broadcast %13 : vector<128x1xf32> to vector<128x128xf32>
    %32 = arith.mulf %31, %29 : vector<128x128xf32>
    %33 = arith.truncf %32 : vector<128x128xf32> to vector<128x128xbf16>
    %cst_12 = arith.constant dense<0.000000e+00> : vector<128x128xf32>
    %34 = tpu.matmul %3, %33, %cst_12 {dimension_numbers = #tpu.dot_dimension_numbers<[1], [0], [0], [1], [0, 0, 1, 1], [], []>} : vector<128x128xbf16>, vector<128x128xbf16>, vector<128x128xf32> -> vector<128x128xf32>
    %35 = arith.addf %34, %32 : vector<128x128xf32>
    %36 = vector.broadcast %13 : vector<128x1xf32> to vector<128x128xf32>
    %37 = arith.mulf %36, %35 : vector<128x128xf32>
    %38 = arith.addf %30, %37 : vector<128x128xf32>
    %39 = vector.broadcast %13 : vector<128x1xf32> to vector<128x128xf32>
    %40 = arith.mulf %39, %37 : vector<128x128xf32>
    %41 = arith.truncf %40 : vector<128x128xf32> to vector<128x128xbf16>
    %cst_13 = arith.constant dense<0.000000e+00> : vector<128x128xf32>
    %42 = tpu.matmul %3, %41, %cst_13 {dimension_numbers = #tpu.dot_dimension_numbers<[1], [0], [0], [1], [0, 0, 1, 1], [], []>} : vector<128x128xbf16>, vector<128x128xbf16>, vector<128x128xf32> -> vector<128x128xf32>
    %43 = arith.addf %42, %40 : vector<128x128xf32>
    %44 = vector.broadcast %13 : vector<128x1xf32> to vector<128x128xf32>
    %45 = arith.mulf %44, %43 : vector<128x128xf32>
    %46 = arith.addf %38, %45 : vector<128x128xf32>
    %47 = vector.broadcast %13 : vector<128x1xf32> to vector<128x128xf32>
    %48 = arith.mulf %47, %45 : vector<128x128xf32>
    %49 = arith.truncf %48 : vector<128x128xf32> to vector<128x128xbf16>
    %cst_14 = arith.constant dense<0.000000e+00> : vector<128x128xf32>
    %50 = tpu.matmul %3, %49, %cst_14 {dimension_numbers = #tpu.dot_dimension_numbers<[1], [0], [0], [1], [0, 0, 1, 1], [], []>} : vector<128x128xbf16>, vector<128x128xbf16>, vector<128x128xf32> -> vector<128x128xf32>
    %51 = arith.addf %50, %48 : vector<128x128xf32>
    %52 = vector.broadcast %13 : vector<128x1xf32> to vector<128x128xf32>
    %53 = arith.mulf %52, %51 : vector<128x128xf32>
    %54 = arith.addf %46, %53 : vector<128x128xf32>
    %cst_15 = arith.constant 1.000000e-01 : f32
    %55 = vector.broadcast %cst_15 : f32 to vector<128x128xf32>
    %56 = arith.mulf %55, %2 : vector<128x128xf32>
    %cst_16 = arith.constant 1.800000e-01 : f32
    %57 = vector.broadcast %cst_16 : f32 to vector<128x128xf32>
    %58 = arith.mulf %57, %54 : vector<128x128xf32>
    %59 = arith.addf %56, %58 : vector<128x128xf32>
    %c0_17 = arith.constant 0 : index
    %c0_18 = arith.constant 0 : index
    %60 = vector.load %arg3[%c0_17, %c0_18] : memref<1x128xf32, #tpu.memory_space<vmem>>, vector<1x128xf32>
    %61 = vector.broadcast %60 : vector<1x128xf32> to vector<128x128xf32>
    %62 = arith.addf %59, %61 : vector<128x128xf32>
    %c0_19 = arith.constant 0 : index
    %c0_20 = arith.constant 0 : index
    %63 = vector.load %arg4[%c0_19, %c0_20] : memref<128x128xf32, #tpu.memory_space<vmem>>, vector<128x128xf32>
    tpu.vector_store %arg4[%c0_19, %c0_20], %62 {strides = array<i32>} : memref<128x128xf32, #tpu.memory_space<vmem>>, vector<128x128xf32>,
    return
  }
}

</mosaic_0001>

<llo_original>
// kernel: ssg_conv.1
$region0: #{ssg_conv.1}
  #allocation0 [shape = 'u32[]', space=smem, size = 0x4, offset = 0x4, fixed_abs, tag = 'smem constant byte address 0x4 - core index']
  #allocation1 [shape = 'u32[144,128]{1,0:T(1,128)}', space=vmem, size = 0x12000, scoped, tag = 'internal scratch']
  #allocation2 [shape = 'bf16[128,128]{1,0:T(16,128)(2,1)}', space=vmem, size = 0x8000, scoped, tag = 'scratch operand']
  #allocation3 [shape = 's32[1]{0}', space=sflag, size = 0x4, scoped, tag = 'scratch operand']
  #allocation4 [shape = 's32[]', space=sflag, size = 0x4, offset = 0, fixed_abs, tag = 'sflag constant byte address 0x0 - dummy sync flag']
  %s0 = inlined_call_operand.vmem [shape: bf16[128,128], index: 0, kind: input, shape index: {}]
  %s1 = inlined_call_operand.vmem [shape: f32[128,32], index: 1, kind: input, shape index: {}]
  %s2 = inlined_call_operand.vmem [shape: f32[32,128], index: 2, kind: input, shape index: {}]
  %s3 = inlined_call_operand.vmem [shape: f32[1,128], index: 3, kind: input, shape index: {}]
  %s4 = inlined_call_operand.vmem [shape: f32[128,128], index: 4, kind: output, shape index: {}]
  %s5 = sld [smem:[#allocation0]]
  $region56: #{ssg_conv.1} parent=0
    _
  %s7 = ssub.s32 1, %s5
  %s8 = scalar_select 0, %s7, %s5
  // Predicated region
  $region2: #{ssg_conv.1} parent=0 // pred_check
    _
  $region3: #{ssg_conv.1} parent=0 // pred_check_branch
    %10 = sbr.rel (0) target = $region5
  $region4: #{ssg_conv.1} parent=0 // pred_region
    _
  $region5: #{ssg_conv.1} parent=0 // pred_fallthru
    _
  // Predicated region
  $region6: #{ssg_conv.1} parent=0 // pred_check
    _
  $region7: #{ssg_conv.1} parent=0 // pred_check_branch
    %12 = sbr.rel (0) target = $region9
  $region8: #{ssg_conv.1} parent=0 // pred_region
    _
  $region9: #{ssg_conv.1} parent=0 // pred_fallthru
    _
  // Predicated region
  $region10: #{ssg_conv.1} parent=0 // pred_check
    _
  $region11: #{ssg_conv.1} parent=0 // pred_check_branch
    %14 = sbr.rel (0) target = $region13
  $region12: #{ssg_conv.1} parent=0 // pred_region
    _
  $region13: #{ssg_conv.1} parent=0 // pred_fallthru
    _
  %p17 = scmp.lt.u32.totalorder 64, 8
  %p18 = pneg %p17
  // Predicated region
  $region14: #{ssg_conv.1} parent=0 // pred_check
    _
  $region15: #{ssg_conv.1} parent=0 // pred_check_branch
    %20 = sbr.rel (%p17) target = $region17
  $region16: #{ssg_conv.1} parent=0 // pred_region
    %s35 = sand.u32 64, 7
    %p36 = scmp.eq.s32.totalorder %s35, 0
    // Predicated region
    $region29: #{ssg_conv.1} parent=16 // pred_check
      %p37 = pneg %p36
    $region30: #{ssg_conv.1} parent=16 // pred_check_branch
      %39 = sbr.rel (%p37) target = $region32
    $region31: #{ssg_conv.1} parent=16 // pred_region
      loop: start=0, step=1, limit=1
      $region33: #{ssg_conv.1} parent=31 // loop_pre_header
        _
      $region34: #{ssg_conv.1} parent=31 // loop_header
        %s41 = sphi 0, %s45
        %p42 = scmp.ge.s32.totalorder %s41, 1
        %s46 = sphi %s0, %s0
        %s47 = sphi [#allocation2], [#allocation2]
      $region35: #{ssg_conv.1} parent=31 // loop_header_branch
        %44 = sbr.rel (%p42) target = $region39
      $region36: #{ssg_conv.1} parent=31 // loop_body
        %v48 = vld [vmem:[%s46] sm:$0xff]
        %49 = vst [vmem:[%s47] sm:$0xff] %v48
        %v50 = vld [vmem:[%s46 + $0x8] sm:$0xff]
        %51 = vst [vmem:[%s47 + $0x8] sm:$0xff] %v50
        %v52 = vld [vmem:[%s46 + $0x10] sm:$0xff]
        %53 = vst [vmem:[%s47 + $0x10] sm:$0xff] %v52
        %v54 = vld [vmem:[%s46 + $0x18] sm:$0xff]
        %55 = vst [vmem:[%s47 + $0x18] sm:$0xff] %v54
        %v56 = vld [vmem:[%s46 + $0x20] sm:$0xff]
        %57 = vst [vmem:[%s47 + $0x20] sm:$0xff] %v56
        %v58 = vld [vmem:[%s46 + $0x28] sm:$0xff]
        %59 = vst [vmem:[%s47 + $0x28] sm:$0xff] %v58
        %v60 = vld [vmem:[%s46 + $0x30] sm:$0xff]
        %61 = vst [vmem:[%s47 + $0x30] sm:$0xff] %v60
        %v62 = vld [vmem:[%s46 + $0x38] sm:$0xff]
        %63 = vst [vmem:[%s47 + $0x38] sm:$0xff] %v62
      $region37: #{ssg_conv.1} parent=31 // loop_footer
        %s45 = sadd.s32 1, %s41
      $region38: #{ssg_conv.1} parent=31 // loop_footer_branch
        %40 = sbr.rel target = $region34
      $region39: #{ssg_conv.1} parent=31 // loop_exit
        _
    $region32: #{ssg_conv.1} parent=16 // pred_fallthru
      _
    %p64 = pneg %p36
    // Predicated region
    $region40: #{ssg_conv.1} parent=16 // pred_check
      _
    $region41: #{ssg_conv.1} parent=16 // pred_check_branch
      %66 = sbr.rel (%p36) target = $region43
    $region42: #{ssg_conv.1} parent=16 // pred_region
      %s67 = sand.u32 64, 7
    $region43: #{ssg_conv.1} parent=16 // pred_fallthru
      _
  $region17: #{ssg_conv.1} parent=0 // pred_fallthru
    _
  // Predicated region
  $region18: #{ssg_conv.1} parent=0 // pred_check
    %p21 = pneg %p17
  $region19: #{ssg_conv.1} parent=0 // pred_check_branch
    %23 = sbr.rel (%p21) target = $region21
  $region20: #{ssg_conv.1} parent=0 // pred_region
    %s24 = sshllo.u32 0, 64
    loop: start=0, step=1, limit=1
    $region22: #{ssg_conv.1} parent=20 // loop_pre_header
      _
    $region23: #{ssg_conv.1} parent=20 // loop_header
      %s26 = sphi 0, %s30
      %p27 = scmp.ge.s32.totalorder %s26, 1
      %s31 = sphi %s0, %s0
      %s32 = sphi [#allocation2], [#allocation2]
    $region24: #{ssg_conv.1} parent=20 // loop_header_branch
      %29 = sbr.rel (%p27) target = $region28
    $region25: #{ssg_conv.1} parent=20 // loop_body
      %v33 = vld [vmem:[%s31] sm:%s24]
      %34 = vst [vmem:[%s32] sm:%s24] %v33
    $region26: #{ssg_conv.1} parent=20 // loop_footer
      %s30 = sadd.s32 1, %s26
    $region27: #{ssg_conv.1} parent=20 // loop_footer_branch
      %25 = sbr.rel target = $region23
    $region28: #{ssg_conv.1} parent=20 // loop_exit
      _
  $region21: #{ssg_conv.1} parent=0 // pred_fallthru
    _
  // Predicated region
  $region44: #{ssg_conv.1} parent=0 // pred_check
    _
  $region45: #{ssg_conv.1} parent=0 // pred_check_branch
    %70 = sbr.rel (0) target = $region47
  $region46: #{ssg_conv.1} parent=0 // pred_region
    %71 = vsyncadd [#allocation3], 1024
  $region47: #{ssg_conv.1} parent=0 // pred_fallthru
    _
  %v72 = vld [vmem:[%s1] sm:$0xff]
  %v73 = vld [vmem:[%s1 + $0x8] sm:$0xff]
  %v74 = vld [vmem:[%s1 + $0x10] sm:$0xff]
  %v75 = vld [vmem:[%s1 + $0x18] sm:$0xff]
  %v76 = vld [vmem:[%s1 + $0x20] sm:$0xff]
  %v77 = vld [vmem:[%s1 + $0x28] sm:$0xff]
  %v78 = vld [vmem:[%s1 + $0x30] sm:$0xff]
  %v79 = vld [vmem:[%s1 + $0x38] sm:$0xff]
  %v80 = vld [vmem:[%s1 + $0x40] sm:$0xff]
  %v81 = vld [vmem:[%s1 + $0x48] sm:$0xff]
  %v82 = vld [vmem:[%s1 + $0x50] sm:$0xff]
  %v83 = vld [vmem:[%s1 + $0x58] sm:$0xff]
  %v84 = vld [vmem:[%s1 + $0x60] sm:$0xff]
  %v85 = vld [vmem:[%s1 + $0x68] sm:$0xff]
  %v86 = vld [vmem:[%s1 + $0x70] sm:$0xff]
  %v87 = vld [vmem:[%s1 + $0x78] sm:$0xff]
  %v88 = vld [vmem:[%s2] sm:$0xff]
  %v89 = vld [vmem:[%s2 + $0x8] sm:$0xff]
  %v90 = vld [vmem:[%s2 + $0x10] sm:$0xff]
  %v91 = vld [vmem:[%s2 + $0x18] sm:$0xff]
  %vm92 = vcmask 261120
  %v94 = vsel %vm92, %v72, 0
  %v97 = vsel %vm92, %v73, 0
  %v100 = vsel %vm92, %v74, 0
  %v103 = vsel %vm92, %v75, 0
  %v106 = vsel %vm92, %v76, 0
  %v109 = vsel %vm92, %v77, 0
  %v112 = vsel %vm92, %v78, 0
  %v115 = vsel %vm92, %v79, 0
  %v118 = vsel %vm92, %v80, 0
  %v121 = vsel %vm92, %v81, 0
  %v124 = vsel %vm92, %v82, 0
  %v127 = vsel %vm92, %v83, 0
  %v130 = vsel %vm92, %v84, 0
  %v133 = vsel %vm92, %v85, 0
  %v136 = vsel %vm92, %v86, 0
  %v139 = vsel %vm92, %v87, 0
  %141 = vmatprep.subr.mxu0 0.0
  %142 = vmatpush1.msra.mxu0 %v88
  %143 = vmatprep.subr.mxu0 0.0
  %144 = vmatpush1.msra.mxu0 %v89
  %145 = vmatprep.subr.mxu0 0.0
  %146 = vmatpush1.msra.mxu0 %v90
  %147 = vmatprep.subr.mxu0 0.0
  %148 = vmatpush1.msra.mxu0 %v91
  %149 = vmatprep.subr.mxu0 0.0
  %150 = vmatpush1.msra.mxu0 0.0
  %151 = vmatprep.subr.mxu0 0.0
  %152 = vmatpush1.msra.mxu0 0.0
  %153 = vmatprep.subr.mxu0 0.0
  %154 = vmatpush1.msra.mxu0 0.0
  %155 = vmatprep.subr.mxu0 0.0
  %156 = vmatpush1.msra.mxu0 0.0
  %157 = vmatprep.subr.mxu0 0.0
  %158 = vmatpush1.msra.mxu0 0.0
  %159 = vmatprep.subr.mxu0 0.0
  %160 = vmatpush1.msra.mxu0 0.0
  %161 = vmatprep.subr.mxu0 0.0
  %162 = vmatpush1.msra.mxu0 0.0
  %163 = vmatprep.subr.mxu0 0.0
  %164 = vmatpush1.msra.mxu0 0.0
  %165 = vmatprep.subr.mxu0 0.0
  %166 = vmatpush1.msra.mxu0 0.0
  %167 = vmatprep.subr.mxu0 0.0
  %168 = vmatpush1.msra.mxu0 0.0
  %169 = vmatprep.subr.mxu0 0.0
  %170 = vmatpush1.msra.mxu0 0.0
  %171 = vmatprep.subr.mxu0 0.0
  %172 = vmatpush1.msra.mxu0 0.0
  %173 = vmatprep.subr.mxu0 0.0
  %174 = vmatpush1.msra.mxu0 0.0
  %175 = vmatprep.subr.mxu0 0.0
  %176 = vmatpush1.msra.mxu0 0.0
  %177 = vmatprep.subr.mxu0 0.0
  %178 = vmatpush1.msra.mxu0 0.0
  %179 = vmatprep.subr.mxu0 0.0
  %180 = vmatpush1.msra.mxu0 0.0
  %181 = vmatprep.subr.mxu0 0.0
  %182 = vmatpush1.msra.mxu0 0.0
  %183 = vmatprep.subr.mxu0 0.0
  %184 = vmatpush1.msra.mxu0 0.0
  %185 = vmatprep.subr.mxu0 0.0
  %186 = vmatpush1.msra.mxu0 0.0
  %187 = vmatprep.subr.mxu0 0.0
  %188 = vmatpush1.msra.mxu0 0.0
  %189 = vmatprep.subr.mxu0 0.0
  %190 = vmatpush1.msra.mxu0 0.0
  %191 = vmatprep.subr.mxu0 0.0
  %192 = vmatpush1.msra.mxu0 0.0
  %193 = vmatprep.subr.mxu0 0.0
  %194 = vmatpush1.msra.mxu0 0.0
  %195 = vmatprep.subr.mxu0 0.0
  %196 = vmatpush1.msra.mxu0 0.0
  %197 = vmatprep.subr.mxu0 0.0
  %198 = vmatpush1.msra.mxu0 0.0
  %199 = vmatprep.subr.mxu0 0.0
  %200 = vmatpush1.msra.mxu0 0.0
  %201 = vmatprep.subr.mxu0 0.0
  %202 = vmatpush1.msra.mxu0 0.0
  %203 = vmatprep.subr.mxu0 0.0
  %204 = vmatpush1.msra.mxu0 0.0
  %205 = vmatprep.mubr.f32.mxu0 0.0
  %206 = vmatmul.mubr.f32.gmra.mrb[0].mxu0 %v94
  %v207 = vpop.f32.mrb[0].mxu0
  %v208 = vadd.f32 0.0, %v207
  %v209 = vpop.f32.mrb[0].mxu0
  %210 = vmatprep.mubr.f32.mxu0 0.0
  %211 = vmatmul.mubr.f32.gmra.mrb[0].mxu0 %v97
  %v212 = vpop.f32.mrb[0].mxu0
  %v213 = vadd.f32 0.0, %v212
  %v214 = vpop.f32.mrb[0].mxu0
  %215 = vmatprep.mubr.f32.mxu0 0.0
  %216 = vmatmul.mubr.f32.gmra.mrb[0].mxu0 %v100
  %v217 = vpop.f32.mrb[0].mxu0
  %v218 = vadd.f32 0.0, %v217
  %v219 = vpop.f32.mrb[0].mxu0
  %220 = vmatprep.mubr.f32.mxu0 0.0
  %221 = vmatmul.mubr.f32.gmra.mrb[0].mxu0 %v103
  %v222 = vpop.f32.mrb[0].mxu0
  %v223 = vadd.f32 0.0, %v222
  %v224 = vpop.f32.mrb[0].mxu0
  %225 = vmatprep.mubr.f32.mxu0 0.0
  %226 = vmatmul.mubr.f32.gmra.mrb[0].mxu0 %v106
  %v227 = vpop.f32.mrb[0].mxu0
  %v228 = vadd.f32 0.0, %v227
  %v229 = vpop.f32.mrb[0].mxu0
  %230 = vmatprep.mubr.f32.mxu0 0.0
  %231 = vmatmul.mubr.f32.gmra.mrb[0].mxu0 %v109
  %v232 = vpop.f32.mrb[0].mxu0
  %v233 = vadd.f32 0.0, %v232
  %v234 = vpop.f32.mrb[0].mxu0
  %235 = vmatprep.mubr.f32.mxu0 0.0
  %236 = vmatmul.mubr.f32.gmra.mrb[0].mxu0 %v112
  %v237 = vpop.f32.mrb[0].mxu0
  %v238 = vadd.f32 0.0, %v237
  %v239 = vpop.f32.mrb[0].mxu0
  %240 = vmatprep.mubr.f32.mxu0 0.0
  %241 = vmatmul.mubr.f32.gmra.mrb[0].mxu0 %v115
  %v242 = vpop.f32.mrb[0].mxu0
  %v243 = vadd.f32 0.0, %v242
  %v244 = vpop.f32.mrb[0].mxu0
  %245 = vmatprep.mubr.f32.mxu0 0.0
  %246 = vmatmul.mubr.f32.gmra.mrb[0].mxu0 %v118
  %v247 = vpop.f32.mrb[0].mxu0
  %v248 = vadd.f32 0.0, %v247
  %v249 = vpop.f32.mrb[0].mxu0
  %250 = vmatprep.mubr.f32.mxu0 0.0
  %251 = vmatmul.mubr.f32.gmra.mrb[0].mxu0 %v121
  %v252 = vpop.f32.mrb[0].mxu0
  %v253 = vadd.f32 0.0, %v252
  %v254 = vpop.f32.mrb[0].mxu0
  %255 = vmatprep.mubr.f32.mxu0 0.0
  %256 = vmatmul.mubr.f32.gmra.mrb[0].mxu0 %v124
  %v257 = vpop.f32.mrb[0].mxu0
  %v258 = vadd.f32 0.0, %v257
  %v259 = vpop.f32.mrb[0].mxu0
  %260 = vmatprep.mubr.f32.mxu0 0.0
  %261 = vmatmul.mubr.f32.gmra.mrb[0].mxu0 %v127
  %v262 = vpop.f32.mrb[0].mxu0
  %v263 = vadd.f32 0.0, %v262
  %v264 = vpop.f32.mrb[0].mxu0
  %265 = vmatprep.mubr.f32.mxu0 0.0
  %266 = vmatmul.mubr.f32.gmra.mrb[0].mxu0 %v130
  %v267 = vpop.f32.mrb[0].mxu0
  %v268 = vadd.f32 0.0, %v267
  %v269 = vpop.f32.mrb[0].mxu0
  %270 = vmatprep.mubr.f32.mxu0 0.0
  %271 = vmatmul.mubr.f32.gmra.mrb[0].mxu0 %v133
  %v272 = vpop.f32.mrb[0].mxu0
  %v273 = vadd.f32 0.0, %v272
  %v274 = vpop.f32.mrb[0].mxu0
  %275 = vmatprep.mubr.f32.mxu0 0.0
  %276 = vmatmul.mubr.f32.gmra.mrb[0].mxu0 %v136
  %v277 = vpop.f32.mrb[0].mxu0
  %v278 = vadd.f32 0.0, %v277
  %v279 = vpop.f32.mrb[0].mxu0
  %280 = vmatprep.mubr.f32.mxu0 0.0
  %281 = vmatmul.mubr.f32.gmra.mrb[0].mxu0 %v139
  %v282 = vpop.f32.mrb[0].mxu0
  %v283 = vadd.f32 0.0, %v282
  %v284 = vpop.f32.mrb[0].mxu0
  %285 = vdwg.mxu0
  %s286 = smul.u32 4, 16
  %s287 = smul.u32 %s286, 1
  %s288 = sshll.u32 %s287, 4
  %289 = dma.done [#allocation3], %s288
  %v290 = vld [vmem:[#allocation2] sm:$0xff]
  %v291 = vld [vmem:[#allocation2 + $0x8] sm:$0xff]
  %v292 = vld [vmem:[#allocation2 + $0x10] sm:$0xff]
  %v293 = vld [vmem:[#allocation2 + $0x18] sm:$0xff]
  %v294 = vld [vmem:[#allocation2 + $0x20] sm:$0xff]
  %v295 = vld [vmem:[#allocation2 + $0x28] sm:$0xff]
  %v296 = vld [vmem:[#allocation2 + $0x30] sm:$0xff]
  %v297 = vld [vmem:[#allocation2 + $0x38] sm:$0xff]
  %v298 = vunpack.c.l.bf16 %v290
  %v299 = vunpack.c.h.bf16 %v290
  %v300 = vunpack.c.l.bf16 %v291
  %v301 = vunpack.c.h.bf16 %v291
  %v302 = vunpack.c.l.bf16 %v292
  %v303 = vunpack.c.h.bf16 %v292
  %v304 = vunpack.c.l.bf16 %v293
  %v305 = vunpack.c.h.bf16 %v293
  %v306 = vunpack.c.l.bf16 %v294
  %v307 = vunpack.c.h.bf16 %v294
  %v308 = vunpack.c.l.bf16 %v295
  %v309 = vunpack.c.h.bf16 %v295
  %v310 = vunpack.c.l.bf16 %v296
  %v311 = vunpack.c.h.bf16 %v296
  %v312 = vunpack.c.l.bf16 %v297
  %v313 = vunpack.c.h.bf16 %v297
  %314 = vadd.xlane.f32.xlu0 %v298
  %v315 = vpop.xlane.xlu0 %314
  %316 = vadd.xlane.f32.xlu0 %v299
  %v317 = vpop.xlane.xlu0 %316
  %318 = vadd.xlane.f32.xlu0 %v300
  %v319 = vpop.xlane.xlu0 %318
  %320 = vadd.xlane.f32.xlu0 %v301
  %v321 = vpop.xlane.xlu0 %320
  %322 = vadd.xlane.f32.xlu0 %v302
  %v323 = vpop.xlane.xlu0 %322
  %324 = vadd.xlane.f32.xlu0 %v303
  %v325 = vpop.xlane.xlu0 %324
  %326 = vadd.xlane.f32.xlu0 %v304
  %v327 = vpop.xlane.xlu0 %326
  %328 = vadd.xlane.f32.xlu0 %v305
  %v329 = vpop.xlane.xlu0 %328
  %330 = vadd.xlane.f32.xlu0 %v306
  %v331 = vpop.xlane.xlu0 %330
  %332 = vadd.xlane.f32.xlu0 %v307
  %v333 = vpop.xlane.xlu0 %332
  %334 = vadd.xlane.f32.xlu0 %v308
  %v335 = vpop.xlane.xlu0 %334
  %336 = vadd.xlane.f32.xlu0 %v309
  %v337 = vpop.xlane.xlu0 %336
  %338 = vadd.xlane.f32.xlu0 %v310
  %v339 = vpop.xlane.xlu0 %338
  %340 = vadd.xlane.f32.xlu0 %v311
  %v341 = vpop.xlane.xlu0 %340
  %342 = vadd.xlane.f32.xlu0 %v312
  %v343 = vpop.xlane.xlu0 %342
  %344 = vadd.xlane.f32.xlu0 %v313
  %v345 = vpop.xlane.xlu0 %344
  %v346 = vadd.f32 %v315, 1.0
  %v347 = vadd.f32 %v317, 1.0
  %v348 = vadd.f32 %v319, 1.0
  %v349 = vadd.f32 %v321, 1.0
  %v350 = vadd.f32 %v323, 1.0
  %v351 = vadd.f32 %v325, 1.0
  %v352 = vadd.f32 %v327, 1.0
  %v353 = vadd.f32 %v329, 1.0
  %v354 = vadd.f32 %v331, 1.0
  %v355 = vadd.f32 %v333, 1.0
  %v356 = vadd.f32 %v335, 1.0
  %v357 = vadd.f32 %v337, 1.0
  %v358 = vadd.f32 %v339, 1.0
  %v359 = vadd.f32 %v341, 1.0
  %v360 = vadd.f32 %v343, 1.0
  %v361 = vadd.f32 %v345, 1.0
  %vm362 = vcmp.gt.f32.partialorder %v346, 0.0
  %vm363 = vcmp.gt.f32.partialorder %v347, 0.0
  %vm364 = vcmp.gt.f32.partialorder %v348, 0.0
  %vm365 = vcmp.gt.f32.partialorder %v349, 0.0
  %vm366 = vcmp.gt.f32.partialorder %v350, 0.0
  %vm367 = vcmp.gt.f32.partialorder %v351, 0.0
  %vm368 = vcmp.gt.f32.partialorder %v352, 0.0
  %vm369 = vcmp.gt.f32.partialorder %v353, 0.0
  %vm370 = vcmp.gt.f32.partialorder %v354, 0.0
  %vm371 = vcmp.gt.f32.partialorder %v355, 0.0
  %vm372 = vcmp.gt.f32.partialorder %v356, 0.0
  %vm373 = vcmp.gt.f32.partialorder %v357, 0.0
  %vm374 = vcmp.gt.f32.partialorder %v358, 0.0
  %vm375 = vcmp.gt.f32.partialorder %v359, 0.0
  %vm376 = vcmp.gt.f32.partialorder %v360, 0.0
  %vm377 = vcmp.gt.f32.partialorder %v361, 0.0
  %v378 = vrsqrt.pop %v346
  %v379 = vrsqrt.pop %v347
  %v380 = vrsqrt.pop %v348
  %v381 = vrsqrt.pop %v349
  %v382 = vrsqrt.pop %v350
  %v383 = vrsqrt.pop %v351
  %v384 = vrsqrt.pop %v352
  %v385 = vrsqrt.pop %v353
  %v386 = vrsqrt.pop %v354
  %v387 = vrsqrt.pop %v355
  %v388 = vrsqrt.pop %v356
  %v389 = vrsqrt.pop %v357
  %v390 = vrsqrt.pop %v358
  %v391 = vrsqrt.pop %v359
  %v392 = vrsqrt.pop %v360
  %v393 = vrsqrt.pop %v361
  %v394 = vsel %vm362, %v378, 0.0
  %v395 = vsel %vm363, %v379, 0.0
  %v396 = vsel %vm364, %v380, 0.0
  %v397 = vsel %vm365, %v381, 0.0
  %v398 = vsel %vm366, %v382, 0.0
  %v399 = vsel %vm367, %v383, 0.0
  %v400 = vsel %vm368, %v384, 0.0
  %v401 = vsel %vm369, %v385, 0.0
  %v402 = vsel %vm370, %v386, 0.0
  %v403 = vsel %vm371, %v387, 0.0
  %v404 = vsel %vm372, %v388, 0.0
  %v405 = vsel %vm373, %v389, 0.0
  %v406 = vsel %vm374, %v390, 0.0
  %v407 = vsel %vm375, %v391, 0.0
  %v408 = vsel %vm376, %v392, 0.0
  %v409 = vsel %vm377, %v393, 0.0
  %v410 = vmul.f32 %v394, %v208
  %v411 = vmul.f32 %v395, %v213
  %v412 = vmul.f32 %v396, %v218
  %v413 = vmul.f32 %v397, %v223
  %v414 = vmul.f32 %v398, %v228
  %v415 = vmul.f32 %v399, %v233
  %v416 = vmul.f32 %v400, %v238
  %v417 = vmul.f32 %v401, %v243
  %v418 = vmul.f32 %v402, %v248
  %v419 = vmul.f32 %v403, %v253
  %v420 = vmul.f32 %v404, %v258
  %v421 = vmul.f32 %v405, %v263
  %v422 = vmul.f32 %v406, %v268
  %v423 = vmul.f32 %v407, %v273
  %v424 = vmul.f32 %v408, %v278
  %v425 = vmul.f32 %v409, %v283
  %v426 = vpack.c.bf16 %v411, %v410
  %v427 = vpack.c.bf16 %v413, %v412
  %v428 = vpack.c.bf16 %v415, %v414
  %v429 = vpack.c.bf16 %v417, %v416
  %v430 = vpack.c.bf16 %v419, %v418
  %v431 = vpack.c.bf16 %v421, %v420
  %v432 = vpack.c.bf16 %v423, %v422
  %v433 = vpack.c.bf16 %v425, %v424
  %434 = vmatprep.subr.bf16.mxu0 0
  %435 = vmatpush1.bf16.msra.mxu0 %v426
  %436 = vmatprep.subr.bf16.mxu0 0
  %437 = vmatpush1.bf16.msra.mxu0 %v427
  %438 = vmatprep.subr.bf16.mxu0 0
  %439 = vmatpush1.bf16.msra.mxu0 %v428
  %440 = vmatprep.subr.bf16.mxu0 0
  %441 = vmatpush1.bf16.msra.mxu0 %v429
  %442 = vmatprep.subr.bf16.mxu0 0
  %443 = vmatpush1.bf16.msra.mxu0 %v430
  %444 = vmatprep.subr.bf16.mxu0 0
  %445 = vmatpush1.bf16.msra.mxu0 %v431
  %446 = vmatprep.subr.bf16.mxu0 0
  %447 = vmatpush1.bf16.msra.mxu0 %v432
  %448 = vmatprep.subr.bf16.mxu0 0
  %449 = vmatpush1.bf16.msra.mxu0 %v433
  %450 = vmatprep.subr.bf16.mxu0 0
  %451 = vmatpush1.bf16.msra.mxu0 0
  %452 = vmatprep.subr.bf16.mxu0 0
  %453 = vmatpush1.bf16.msra.mxu0 0
  %454 = vmatprep.subr.bf16.mxu0 0
  %455 = vmatpush1.bf16.msra.mxu0 0
  %456 = vmatprep.subr.bf16.mxu0 0
  %457 = vmatpush1.bf16.msra.mxu0 0
  %458 = vmatprep.subr.bf16.mxu0 0
  %459 = vmatpush1.bf16.msra.mxu0 0
  %460 = vmatprep.subr.bf16.mxu0 0
  %461 = vmatpush1.bf16.msra.mxu0 0
  %462 = vmatprep.subr.bf16.mxu0 0
  %463 = vmatpush1.bf16.msra.mxu0 0
  %464 = vmatprep.subr.bf16.mxu0 0
  %465 = vmatpush1.bf16.msra.mxu0 0
  %466 = vmatprep.mubr.bf16.mxu0 0
  %467 = vmatmul.mubr.bf16.gmra.mrb[0].mxu0 %v290
  %v468 = vpop.f32.mrb[0].mxu0
  %v469 = vadd.f32 %v410, %v468
  %v470 = vpop.f32.mrb[0].mxu0
  %v471 = vpop.f32.mrb[0].mxu0
  %v472 = vadd.f32 %v411, %v471
  %v473 = vpop.f32.mrb[0].mxu0
  %474 = vmatprep.mubr.bf16.mxu0 0
  %475 = vmatmul.mubr.bf16.gmra.mrb[0].mxu0 %v291
  %v476 = vpop.f32.mrb[0].mxu0
  %v477 = vadd.f32 %v412, %v476
  %v478 = vpop.f32.mrb[0].mxu0
  %v479 = vpop.f32.mrb[0].mxu0
  %v480 = vadd.f32 %v413, %v479
  %v481 = vpop.f32.mrb[0].mxu0
  %482 = vmatprep.mubr.bf16.mxu0 0
  %483 = vmatmul.mubr.bf16.gmra.mrb[0].mxu0 %v292
  %v484 = vpop.f32.mrb[0].mxu0
  %v485 = vadd.f32 %v414, %v484
  %v486 = vpop.f32.mrb[0].mxu0
  %v487 = vpop.f32.mrb[0].mxu0
  %v488 = vadd.f32 %v415, %v487
  %v489 = vpop.f32.mrb[0].mxu0
  %490 = vmatprep.mubr.bf16.mxu0 0
  %491 = vmatmul.mubr.bf16.gmra.mrb[0].mxu0 %v293
  %v492 = vpop.f32.mrb[0].mxu0
  %v493 = vadd.f32 %v416, %v492
  %v494 = vpop.f32.mrb[0].mxu0
  %v495 = vpop.f32.mrb[0].mxu0
  %v496 = vadd.f32 %v417, %v495
  %v497 = vpop.f32.mrb[0].mxu0
  %498 = vmatprep.mubr.bf16.mxu0 0
  %499 = vmatmul.mubr.bf16.gmra.mrb[0].mxu0 %v294
  %v500 = vpop.f32.mrb[0].mxu0
  %v501 = vadd.f32 %v418, %v500
  %v502 = vpop.f32.mrb[0].mxu0
  %v503 = vpop.f32.mrb[0].mxu0
  %v504 = vadd.f32 %v419, %v503
  %v505 = vpop.f32.mrb[0].mxu0
  %506 = vmatprep.mubr.bf16.mxu0 0
  %507 = vmatmul.mubr.bf16.gmra.mrb[0].mxu0 %v295
  %v508 = vpop.f32.mrb[0].mxu0
  %v509 = vadd.f32 %v420, %v508
  %v510 = vpop.f32.mrb[0].mxu0
  %v511 = vpop.f32.mrb[0].mxu0
  %v512 = vadd.f32 %v421, %v511
  %v513 = vpop.f32.mrb[0].mxu0
  %514 = vmatprep.mubr.bf16.mxu0 0
  %515 = vmatmul.mubr.bf16.gmra.mrb[0].mxu0 %v296
  %v516 = vpop.f32.mrb[0].mxu0
  %v517 = vadd.f32 %v422, %v516
  %v518 = vpop.f32.mrb[0].mxu0
  %v519 = vpop.f32.mrb[0].mxu0
  %v520 = vadd.f32 %v423, %v519
  %v521 = vpop.f32.mrb[0].mxu0
  %522 = vmatprep.mubr.bf16.mxu0 0
  %523 = vmatmul.mubr.bf16.gmra.mrb[0].mxu0 %v297
  %v524 = vpop.f32.mrb[0].mxu0
  %v525 = vadd.f32 %v424, %v524
  %v526 = vpop.f32.mrb[0].mxu0
  %v527 = vpop.f32.mrb[0].mxu0
  %v528 = vadd.f32 %v425, %v527
  %v529 = vpop.f32.mrb[0].mxu0
  %530 = vdwg.mxu0
  %v531 = vmul.f32 %v394, %v469
  %v532 = vmul.f32 %v395, %v472
  %v533 = vmul.f32 %v396, %v477
  %v534 = vmul.f32 %v397, %v480
  %v535 = vmul.f32 %v398, %v485
  %v536 = vmul.f32 %v399, %v488
  %v537 = vmul.f32 %v400, %v493
  %v538 = vmul.f32 %v401, %v496
  %v539 = vmul.f32 %v402, %v501
  %v540 = vmul.f32 %v403, %v504
  %v541 = vmul.f32 %v404, %v509
  %v542 = vmul.f32 %v405, %v512
  %v543 = vmul.f32 %v406, %v517
  %v544 = vmul.f32 %v407, %v520
  %v545 = vmul.f32 %v408, %v525
  %v546 = vmul.f32 %v409, %v528
  %v547 = vadd.f32 %v531, 0.0
  %v548 = vadd.f32 %v532, 0.0
  %v549 = vadd.f32 %v533, 0.0
  %v550 = vadd.f32 %v534, 0.0
  %v551 = vadd.f32 %v535, 0.0
  %v552 = vadd.f32 %v536, 0.0
  %v553 = vadd.f32 %v537, 0.0
  %v554 = vadd.f32 %v538, 0.0
  %v555 = vadd.f32 %v539, 0.0
  %v556 = vadd.f32 %v540, 0.0
  %v557 = vadd.f32 %v541, 0.0
  %v558 = vadd.f32 %v542, 0.0
  %v559 = vadd.f32 %v543, 0.0
  %v560 = vadd.f32 %v544, 0.0
  %v561 = vadd.f32 %v545, 0.0
  %v562 = vadd.f32 %v546, 0.0
  %v563 = vmul.f32 %v394, %v531
  %v564 = vmul.f32 %v395, %v532
  %v565 = vmul.f32 %v396, %v533
  %v566 = vmul.f32 %v397, %v534
  %v567 = vmul.f32 %v398, %v535
  %v568 = vmul.f32 %v399, %v536
  %v569 = vmul.f32 %v400, %v537
  %v570 = vmul.f32 %v401, %v538
  %v571 = vmul.f32 %v402, %v539
  %v572 = vmul.f32 %v403, %v540
  %v573 = vmul.f32 %v404, %v541
  %v574 = vmul.f32 %v405, %v542
  %v575 = vmul.f32 %v406, %v543
  %v576 = vmul.f32 %v407, %v544
  %v577 = vmul.f32 %v408, %v545
  %v578 = vmul.f32 %v409, %v546
  %v579 = vpack.c.bf16 %v564, %v563
  %v580 = vpack.c.bf16 %v566, %v565
  %v581 = vpack.c.bf16 %v568, %v567
  %v582 = vpack.c.bf16 %v570, %v569
  %v583 = vpack.c.bf16 %v572, %v571
  %v584 = vpack.c.bf16 %v574, %v573
  %v585 = vpack.c.bf16 %v576, %v575
  %v586 = vpack.c.bf16 %v578, %v577
  %587 = vmatprep.subr.bf16.mxu0 0
  %588 = vmatpush1.bf16.msra.mxu0 %v579
  %589 = vmatprep.subr.bf16.mxu0 0
  %590 = vmatpush1.bf16.msra.mxu0 %v580
  %591 = vmatprep.subr.bf16.mxu0 0
  %592 = vmatpush1.bf16.msra.mxu0 %v581
  %593 = vmatprep.subr.bf16.mxu0 0
  %594 = vmatpush1.bf16.msra.mxu0 %v582
  %595 = vmatprep.subr.bf16.mxu0 0
  %596 = vmatpush1.bf16.msra.mxu0 %v583
  %597 = vmatprep.subr.bf16.mxu0 0
  %598 = vmatpush1.bf16.msra.mxu0 %v584
  %599 = vmatprep.subr.bf16.mxu0 0
  %600 = vmatpush1.bf16.msra.mxu0 %v585
  %601 = vmatprep.subr.bf16.mxu0 0
  %602 = vmatpush1.bf16.msra.mxu0 %v586
  %603 = vmatprep.subr.bf16.mxu0 0
  %604 = vmatpush1.bf16.msra.mxu0 0
  %605 = vmatprep.subr.bf16.mxu0 0
  %606 = vmatpush1.bf16.msra.mxu0 0
  %607 = vmatprep.subr.bf16.mxu0 0
  %608 = vmatpush1.bf16.msra.mxu0 0
  %609 = vmatprep.subr.bf16.mxu0 0
  %610 = vmatpush1.bf16.msra.mxu0 0
  %611 = vmatprep.subr.bf16.mxu0 0
  %612 = vmatpush1.bf16.msra.mxu0 0
  %613 = vmatprep.subr.bf16.mxu0 0
  %614 = vmatpush1.bf16.msra.mxu0 0
  %615 = vmatprep.subr.bf16.mxu0 0
  %616 = vmatpush1.bf16.msra.mxu0 0
  %617 = vmatprep.subr.bf16.mxu0 0
  %618 = vmatpush1.bf16.msra.mxu0 0
  %619 = vmatprep.mubr.bf16.mxu0 0
  %620 = vmatmul.mubr.bf16.gmra.mrb[0].mxu0 %v290
  %v621 = vpop.f32.mrb[0].mxu0
  %v622 = vadd.f32 %v563, %v621
  %v623 = vpop.f32.mrb[0].mxu0
  %v624 = vpop.f32.mrb[0].mxu0
  %v625 = vadd.f32 %v564, %v624
  %v626 = vpop.f32.mrb[0].mxu0
  %627 = vmatprep.mubr.bf16.mxu0 0
  %628 = vmatmul.mubr.bf16.gmra.mrb[0].mxu0 %v291
  %v629 = vpop.f32.mrb[0].mxu0
  %v630 = vadd.f32 %v565, %v629
  %v631 = vpop.f32.mrb[0].mxu0
  %v632 = vpop.f32.mrb[0].mxu0
  %v633 = vadd.f32 %v566, %v632
  %v634 = vpop.f32.mrb[0].mxu0
  %635 = vmatprep.mubr.bf16.mxu0 0
  %636 = vmatmul.mubr.bf16.gmra.mrb[0].mxu0 %v292
  %v637 = vpop.f32.mrb[0].mxu0
  %v638 = vadd.f32 %v567, %v637
  %v639 = vpop.f32.mrb[0].mxu0
  %v640 = vpop.f32.mrb[0].mxu0
  %v641 = vadd.f32 %v568, %v640
  %v642 = vpop.f32.mrb[0].mxu0
  %643 = vmatprep.mubr.bf16.mxu0 0
  %644 = vmatmul.mubr.bf16.gmra.mrb[0].mxu0 %v293
  %v645 = vpop.f32.mrb[0].mxu0
  %v646 = vadd.f32 %v569, %v645
  %v647 = vpop.f32.mrb[0].mxu0
  %v648 = vpop.f32.mrb[0].mxu0
  %v649 = vadd.f32 %v570, %v648
  %v650 = vpop.f32.mrb[0].mxu0
  %651 = vmatprep.mubr.bf16.mxu0 0
  %652 = vmatmul.mubr.bf16.gmra.mrb[0].mxu0 %v294
  %v653 = vpop.f32.mrb[0].mxu0
  %v654 = vadd.f32 %v571, %v653
  %v655 = vpop.f32.mrb[0].mxu0
  %v656 = vpop.f32.mrb[0].mxu0
  %v657 = vadd.f32 %v572, %v656
  %v658 = vpop.f32.mrb[0].mxu0
  %659 = vmatprep.mubr.bf16.mxu0 0
  %660 = vmatmul.mubr.bf16.gmra.mrb[0].mxu0 %v295
  %v661 = vpop.f32.mrb[0].mxu0
  %v662 = vadd.f32 %v573, %v661
  %v663 = vpop.f32.mrb[0].mxu0
  %v664 = vpop.f32.mrb[0].mxu0
  %v665 = vadd.f32 %v574, %v664
  %v666 = vpop.f32.mrb[0].mxu0
  %667 = vmatprep.mubr.bf16.mxu0 0
  %668 = vmatmul.mubr.bf16.gmra.mrb[0].mxu0 %v296
  %v669 = vpop.f32.mrb[0].mxu0
  %v670 = vadd.f32 %v575, %v669
  %v671 = vpop.f32.mrb[0].mxu0
  %v672 = vpop.f32.mrb[0].mxu0
  %v673 = vadd.f32 %v576, %v672
  %v674 = vpop.f32.mrb[0].mxu0
  %675 = vmatprep.mubr.bf16.mxu0 0
  %676 = vmatmul.mubr.bf16.gmra.mrb[0].mxu0 %v297
  %v677 = vpop.f32.mrb[0].mxu0
  %v678 = vadd.f32 %v577, %v677
  %v679 = vpop.f32.mrb[0].mxu0
  %v680 = vpop.f32.mrb[0].mxu0
  %v681 = vadd.f32 %v578, %v680
  %v682 = vpop.f32.mrb[0].mxu0
  %683 = vdwg.mxu0
  %v684 = vmul.f32 %v394, %v622
  %v685 = vmul.f32 %v395, %v625
  %v686 = vmul.f32 %v396, %v630
  %v687 = vmul.f32 %v397, %v633
  %v688 = vmul.f32 %v398, %v638
  %v689 = vmul.f32 %v399, %v641
  %v690 = vmul.f32 %v400, %v646
  %v691 = vmul.f32 %v401, %v649
  %v692 = vmul.f32 %v402, %v654
  %v693 = vmul.f32 %v403, %v657
  %v694 = vmul.f32 %v404, %v662
  %v695 = vmul.f32 %v405, %v665
  %v696 = vmul.f32 %v406, %v670
  %v697 = vmul.f32 %v407, %v673
  %v698 = vmul.f32 %v408, %v678
  %v699 = vmul.f32 %v409, %v681
  %v700 = vadd.f32 %v547, %v684
  %v701 = vadd.f32 %v548, %v685
  %v702 = vadd.f32 %v549, %v686
  %v703 = vadd.f32 %v550, %v687
  %v704 = vadd.f32 %v551, %v688
  %v705 = vadd.f32 %v552, %v689
  %v706 = vadd.f32 %v553, %v690
  %v707 = vadd.f32 %v554, %v691
  %v708 = vadd.f32 %v555, %v692
  %v709 = vadd.f32 %v556, %v693
  %v710 = vadd.f32 %v557, %v694
  %v711 = vadd.f32 %v558, %v695
  %v712 = vadd.f32 %v559, %v696
  %v713 = vadd.f32 %v560, %v697
  %v714 = vadd.f32 %v561, %v698
  %v715 = vadd.f32 %v562, %v699
  %v716 = vmul.f32 %v394, %v684
  %v717 = vmul.f32 %v395, %v685
  %v718 = vmul.f32 %v396, %v686
  %v719 = vmul.f32 %v397, %v687
  %v720 = vmul.f32 %v398, %v688
  %v721 = vmul.f32 %v399, %v689
  %v722 = vmul.f32 %v400, %v690
  %v723 = vmul.f32 %v401, %v691
  %v724 = vmul.f32 %v402, %v692
  %v725 = vmul.f32 %v403, %v693
  %v726 = vmul.f32 %v404, %v694
  %v727 = vmul.f32 %v405, %v695
  %v728 = vmul.f32 %v406, %v696
  %v729 = vmul.f32 %v407, %v697
  %v730 = vmul.f32 %v408, %v698
  %v731 = vmul.f32 %v409, %v699
  %v732 = vpack.c.bf16 %v717, %v716
  %v733 = vpack.c.bf16 %v719, %v718
  %v734 = vpack.c.bf16 %v721, %v720
  %v735 = vpack.c.bf16 %v723, %v722
  %v736 = vpack.c.bf16 %v725, %v724
  %v737 = vpack.c.bf16 %v727, %v726
  %v738 = vpack.c.bf16 %v729, %v728
  %v739 = vpack.c.bf16 %v731, %v730
  %740 = vmatprep.subr.bf16.mxu0 0
  %741 = vmatpush1.bf16.msra.mxu0 %v732
  %742 = vmatprep.subr.bf16.mxu0 0
  %743 = vmatpush1.bf16.msra.mxu0 %v733
  %744 = vmatprep.subr.bf16.mxu0 0
  %745 = vmatpush1.bf16.msra.mxu0 %v734
  %746 = vmatprep.subr.bf16.mxu0 0
  %747 = vmatpush1.bf16.msra.mxu0 %v735
  %748 = vmatprep.subr.bf16.mxu0 0
  %749 = vmatpush1.bf16.msra.mxu0 %v736
  %750 = vmatprep.subr.bf16.mxu0 0
  %751 = vmatpush1.bf16.msra.mxu0 %v737
  %752 = vmatprep.subr.bf16.mxu0 0
  %753 = vmatpush1.bf16.msra.mxu0 %v738
  %754 = vmatprep.subr.bf16.mxu0 0
  %755 = vmatpush1.bf16.msra.mxu0 %v739
  %756 = vmatprep.subr.bf16.mxu0 0
  %757 = vmatpush1.bf16.msra.mxu0 0
  %758 = vmatprep.subr.bf16.mxu0 0
  %759 = vmatpush1.bf16.msra.mxu0 0
  %760 = vmatprep.subr.bf16.mxu0 0
  %761 = vmatpush1.bf16.msra.mxu0 0
  %762 = vmatprep.subr.bf16.mxu0 0
  %763 = vmatpush1.bf16.msra.mxu0 0
  %764 = vmatprep.subr.bf16.mxu0 0
  %765 = vmatpush1.bf16.msra.mxu0 0
  %766 = vmatprep.subr.bf16.mxu0 0
  %767 = vmatpush1.bf16.msra.mxu0 0
  %768 = vmatprep.subr.bf16.mxu0 0
  %769 = vmatpush1.bf16.msra.mxu0 0
  %770 = vmatprep.subr.bf16.mxu0 0
  %771 = vmatpush1.bf16.msra.mxu0 0
  %772 = vmatprep.mubr.bf16.mxu0 0
  %773 = vmatmul.mubr.bf16.gmra.mrb[0].mxu0 %v290
  %v774 = vpop.f32.mrb[0].mxu0
  %v775 = vadd.f32 %v716, %v774
  %v776 = vpop.f32.mrb[0].mxu0
  %v777 = vpop.f32.mrb[0].mxu0
  %v778 = vadd.f32 %v717, %v777
  %v779 = vpop.f32.mrb[0].mxu0
  %780 = vmatprep.mubr.bf16.mxu0 0
  %781 = vmatmul.mubr.bf16.gmra.mrb[0].mxu0 %v291
  %v782 = vpop.f32.mrb[0].mxu0
  %v783 = vadd.f32 %v718, %v782
  %v784 = vpop.f32.mrb[0].mxu0
  %v785 = vpop.f32.mrb[0].mxu0
  %v786 = vadd.f32 %v719, %v785
  %v787 = vpop.f32.mrb[0].mxu0
  %788 = vmatprep.mubr.bf16.mxu0 0
  %789 = vmatmul.mubr.bf16.gmra.mrb[0].mxu0 %v292
  %v790 = vpop.f32.mrb[0].mxu0
  %v791 = vadd.f32 %v720, %v790
  %v792 = vpop.f32.mrb[0].mxu0
  %v793 = vpop.f32.mrb[0].mxu0
  %v794 = vadd.f32 %v721, %v793
  %v795 = vpop.f32.mrb[0].mxu0
  %796 = vmatprep.mubr.bf16.mxu0 0
  %797 = vmatmul.mubr.bf16.gmra.mrb[0].mxu0 %v293
  %v798 = vpop.f32.mrb[0].mxu0
  %v799 = vadd.f32 %v722, %v798
  %v800 = vpop.f32.mrb[0].mxu0
  %v801 = vpop.f32.mrb[0].mxu0
  %v802 = vadd.f32 %v723, %v801
  %v803 = vpop.f32.mrb[0].mxu0
  %804 = vmatprep.mubr.bf16.mxu0 0
  %805 = vmatmul.mubr.bf16.gmra.mrb[0].mxu0 %v294
  %v806 = vpop.f32.mrb[0].mxu0
  %v807 = vadd.f32 %v724, %v806
  %v808 = vpop.f32.mrb[0].mxu0
  %v809 = vpop.f32.mrb[0].mxu0
  %v810 = vadd.f32 %v725, %v809
  %v811 = vpop.f32.mrb[0].mxu0
  %812 = vmatprep.mubr.bf16.mxu0 0
  %813 = vmatmul.mubr.bf16.gmra.mrb[0].mxu0 %v295
  %v814 = vpop.f32.mrb[0].mxu0
  %v815 = vadd.f32 %v726, %v814
  %v816 = vpop.f32.mrb[0].mxu0
  %v817 = vpop.f32.mrb[0].mxu0
  %v818 = vadd.f32 %v727, %v817
  %v819 = vpop.f32.mrb[0].mxu0
  %820 = vmatprep.mubr.bf16.mxu0 0
  %821 = vmatmul.mubr.bf16.gmra.mrb[0].mxu0 %v296
  %v822 = vpop.f32.mrb[0].mxu0
  %v823 = vadd.f32 %v728, %v822
  %v824 = vpop.f32.mrb[0].mxu0
  %v825 = vpop.f32.mrb[0].mxu0
  %v826 = vadd.f32 %v729, %v825
  %v827 = vpop.f32.mrb[0].mxu0
  %828 = vmatprep.mubr.bf16.mxu0 0
  %829 = vmatmul.mubr.bf16.gmra.mrb[0].mxu0 %v297
  %v830 = vpop.f32.mrb[0].mxu0
  %v831 = vadd.f32 %v730, %v830
  %v832 = vpop.f32.mrb[0].mxu0
  %v833 = vpop.f32.mrb[0].mxu0
  %v834 = vadd.f32 %v731, %v833
  %v835 = vpop.f32.mrb[0].mxu0
  %836 = vdwg.mxu0
  %v837 = vmul.f32 %v394, %v775
  %v838 = vmul.f32 %v395, %v778
  %v839 = vmul.f32 %v396, %v783
  %v840 = vmul.f32 %v397, %v786
  %v841 = vmul.f32 %v398, %v791
  %v842 = vmul.f32 %v399, %v794
  %v843 = vmul.f32 %v400, %v799
  %v844 = vmul.f32 %v401, %v802
  %v845 = vmul.f32 %v402, %v807
  %v846 = vmul.f32 %v403, %v810
  %v847 = vmul.f32 %v404, %v815
  %v848 = vmul.f32 %v405, %v818
  %v849 = vmul.f32 %v406, %v823
  %v850 = vmul.f32 %v407, %v826
  %v851 = vmul.f32 %v408, %v831
  %v852 = vmul.f32 %v409, %v834
  %v853 = vadd.f32 %v700, %v837
  %v854 = vadd.f32 %v701, %v838
  %v855 = vadd.f32 %v702, %v839
  %v856 = vadd.f32 %v703, %v840
  %v857 = vadd.f32 %v704, %v841
  %v858 = vadd.f32 %v705, %v842
  %v859 = vadd.f32 %v706, %v843
  %v860 = vadd.f32 %v707, %v844
  %v861 = vadd.f32 %v708, %v845
  %v862 = vadd.f32 %v709, %v846
  %v863 = vadd.f32 %v710, %v847
  %v864 = vadd.f32 %v711, %v848
  %v865 = vadd.f32 %v712, %v849
  %v866 = vadd.f32 %v713, %v850
  %v867 = vadd.f32 %v714, %v851
  %v868 = vadd.f32 %v715, %v852
  %v869 = vmul.f32 %v394, %v837
  %v870 = vmul.f32 %v395, %v838
  %v871 = vmul.f32 %v396, %v839
  %v872 = vmul.f32 %v397, %v840
  %v873 = vmul.f32 %v398, %v841
  %v874 = vmul.f32 %v399, %v842
  %v875 = vmul.f32 %v400, %v843
  %v876 = vmul.f32 %v401, %v844
  %v877 = vmul.f32 %v402, %v845
  %v878 = vmul.f32 %v403, %v846
  %v879 = vmul.f32 %v404, %v847
  %v880 = vmul.f32 %v405, %v848
  %v881 = vmul.f32 %v406, %v849
  %v882 = vmul.f32 %v407, %v850
  %v883 = vmul.f32 %v408, %v851
  %v884 = vmul.f32 %v409, %v852
  %v885 = vpack.c.bf16 %v870, %v869
  %v886 = vpack.c.bf16 %v872, %v871
  %v887 = vpack.c.bf16 %v874, %v873
  %v888 = vpack.c.bf16 %v876, %v875
  %v889 = vpack.c.bf16 %v878, %v877
  %v890 = vpack.c.bf16 %v880, %v879
  %v891 = vpack.c.bf16 %v882, %v881
  %v892 = vpack.c.bf16 %v884, %v883
  %893 = vmatprep.subr.bf16.mxu0 0
  %894 = vmatpush1.bf16.msra.mxu0 %v885
  %895 = vmatprep.subr.bf16.mxu0 0
  %896 = vmatpush1.bf16.msra.mxu0 %v886
  %897 = vmatprep.subr.bf16.mxu0 0
  %898 = vmatpush1.bf16.msra.mxu0 %v887
  %899 = vmatprep.subr.bf16.mxu0 0
  %900 = vmatpush1.bf16.msra.mxu0 %v888
  %901 = vmatprep.subr.bf16.mxu0 0
  %902 = vmatpush1.bf16.msra.mxu0 %v889
  %903 = vmatprep.subr.bf16.mxu0 0
  %904 = vmatpush1.bf16.msra.mxu0 %v890
  %905 = vmatprep.subr.bf16.mxu0 0
  %906 = vmatpush1.bf16.msra.mxu0 %v891
  %907 = vmatprep.subr.bf16.mxu0 0
  %908 = vmatpush1.bf16.msra.mxu0 %v892
  %909 = vmatprep.subr.bf16.mxu0 0
  %910 = vmatpush1.bf16.msra.mxu0 0
  %911 = vmatprep.subr.bf16.mxu0 0
  %912 = vmatpush1.bf16.msra.mxu0 0
  %913 = vmatprep.subr.bf16.mxu0 0
  %914 = vmatpush1.bf16.msra.mxu0 0
  %915 = vmatprep.subr.bf16.mxu0 0
  %916 = vmatpush1.bf16.msra.mxu0 0
  %917 = vmatprep.subr.bf16.mxu0 0
  %918 = vmatpush1.bf16.msra.mxu0 0
  %919 = vmatprep.subr.bf16.mxu0 0
  %920 = vmatpush1.bf16.msra.mxu0 0
  %921 = vmatprep.subr.bf16.mxu0 0
  %922 = vmatpush1.bf16.msra.mxu0 0
  %923 = vmatprep.subr.bf16.mxu0 0
  %924 = vmatpush1.bf16.msra.mxu0 0
  %925 = vmatprep.mubr.bf16.mxu0 0
  %926 = vmatmul.mubr.bf16.gmra.mrb[0].mxu0 %v290
  %v927 = vpop.f32.mrb[0].mxu0
  %v928 = vadd.f32 %v869, %v927
  %v929 = vpop.f32.mrb[0].mxu0
  %v930 = vpop.f32.mrb[0].mxu0
  %v931 = vadd.f32 %v870, %v930
  %v932 = vpop.f32.mrb[0].mxu0
  %933 = vmatprep.mubr.bf16.mxu0 0
  %934 = vmatmul.mubr.bf16.gmra.mrb[0].mxu0 %v291
  %v935 = vpop.f32.mrb[0].mxu0
  %v936 = vadd.f32 %v871, %v935
  %v937 = vpop.f32.mrb[0].mxu0
  %v938 = vpop.f32.mrb[0].mxu0
  %v939 = vadd.f32 %v872, %v938
  %v940 = vpop.f32.mrb[0].mxu0
  %941 = vmatprep.mubr.bf16.mxu0 0
  %942 = vmatmul.mubr.bf16.gmra.mrb[0].mxu0 %v292
  %v943 = vpop.f32.mrb[0].mxu0
  %v944 = vadd.f32 %v873, %v943
  %v945 = vpop.f32.mrb[0].mxu0
  %v946 = vpop.f32.mrb[0].mxu0
  %v947 = vadd.f32 %v874, %v946
  %v948 = vpop.f32.mrb[0].mxu0
  %949 = vmatprep.mubr.bf16.mxu0 0
  %950 = vmatmul.mubr.bf16.gmra.mrb[0].mxu0 %v293
  %v951 = vpop.f32.mrb[0].mxu0
  %v952 = vadd.f32 %v875, %v951
  %v953 = vpop.f32.mrb[0].mxu0
  %v954 = vpop.f32.mrb[0].mxu0
  %v955 = vadd.f32 %v876, %v954
  %v956 = vpop.f32.mrb[0].mxu0
  %957 = vmatprep.mubr.bf16.mxu0 0
  %958 = vmatmul.mubr.bf16.gmra.mrb[0].mxu0 %v294
  %v959 = vpop.f32.mrb[0].mxu0
  %v960 = vadd.f32 %v877, %v959
  %v961 = vpop.f32.mrb[0].mxu0
  %v962 = vpop.f32.mrb[0].mxu0
  %v963 = vadd.f32 %v878, %v962
  %v964 = vpop.f32.mrb[0].mxu0
  %965 = vmatprep.mubr.bf16.mxu0 0
  %966 = vmatmul.mubr.bf16.gmra.mrb[0].mxu0 %v295
  %v967 = vpop.f32.mrb[0].mxu0
  %v968 = vadd.f32 %v879, %v967
  %v969 = vpop.f32.mrb[0].mxu0
  %v970 = vpop.f32.mrb[0].mxu0
  %v971 = vadd.f32 %v880, %v970
  %v972 = vpop.f32.mrb[0].mxu0
  %973 = vmatprep.mubr.bf16.mxu0 0
  %974 = vmatmul.mubr.bf16.gmra.mrb[0].mxu0 %v296
  %v975 = vpop.f32.mrb[0].mxu0
  %v976 = vadd.f32 %v881, %v975
  %v977 = vpop.f32.mrb[0].mxu0
  %v978 = vpop.f32.mrb[0].mxu0
  %v979 = vadd.f32 %v882, %v978
  %v980 = vpop.f32.mrb[0].mxu0
  %981 = vmatprep.mubr.bf16.mxu0 0
  %982 = vmatmul.mubr.bf16.gmra.mrb[0].mxu0 %v297
  %v983 = vpop.f32.mrb[0].mxu0
  %v984 = vadd.f32 %v883, %v983
  %v985 = vpop.f32.mrb[0].mxu0
  %v986 = vpop.f32.mrb[0].mxu0
  %v987 = vadd.f32 %v884, %v986
  %v988 = vpop.f32.mrb[0].mxu0
  %989 = vdwg.mxu0
  %v990 = vmul.f32 %v394, %v928
  %v991 = vmul.f32 %v395, %v931
  %v992 = vmul.f32 %v396, %v936
  %v993 = vmul.f32 %v397, %v939
  %v994 = vmul.f32 %v398, %v944
  %v995 = vmul.f32 %v399, %v947
  %v996 = vmul.f32 %v400, %v952
  %v997 = vmul.f32 %v401, %v955
  %v998 = vmul.f32 %v402, %v960
  %v999 = vmul.f32 %v403, %v963
  %v1000 = vmul.f32 %v404, %v968
  %v1001 = vmul.f32 %v405, %v971
  %v1002 = vmul.f32 %v406, %v976
  %v1003 = vmul.f32 %v407, %v979
  %v1004 = vmul.f32 %v408, %v984
  %v1005 = vmul.f32 %v409, %v987
  %v1006 = vadd.f32 %v853, %v990
  %v1007 = vadd.f32 %v854, %v991
  %v1008 = vadd.f32 %v855, %v992
  %v1009 = vadd.f32 %v856, %v993
  %v1010 = vadd.f32 %v857, %v994
  %v1011 = vadd.f32 %v858, %v995
  %v1012 = vadd.f32 %v859, %v996
  %v1013 = vadd.f32 %v860, %v997
  %v1014 = vadd.f32 %v861, %v998
  %v1015 = vadd.f32 %v862, %v999
  %v1016 = vadd.f32 %v863, %v1000
  %v1017 = vadd.f32 %v864, %v1001
  %v1018 = vadd.f32 %v865, %v1002
  %v1019 = vadd.f32 %v866, %v1003
  %v1020 = vadd.f32 %v867, %v1004
  %v1021 = vadd.f32 %v868, %v1005
  %v1022 = vmul.f32 %v394, %v990
  %v1023 = vmul.f32 %v395, %v991
  %v1024 = vmul.f32 %v396, %v992
  %v1025 = vmul.f32 %v397, %v993
  %v1026 = vmul.f32 %v398, %v994
  %v1027 = vmul.f32 %v399, %v995
  %v1028 = vmul.f32 %v400, %v996
  %v1029 = vmul.f32 %v401, %v997
  %v1030 = vmul.f32 %v402, %v998
  %v1031 = vmul.f32 %v403, %v999
  %v1032 = vmul.f32 %v404, %v1000
  %v1033 = vmul.f32 %v405, %v1001
  %v1034 = vmul.f32 %v406, %v1002
  %v1035 = vmul.f32 %v407, %v1003
  %v1036 = vmul.f32 %v408, %v1004
  %v1037 = vmul.f32 %v409, %v1005
  %v1038 = vpack.c.bf16 %v1023, %v1022
  %v1039 = vpack.c.bf16 %v1025, %v1024
  %v1040 = vpack.c.bf16 %v1027, %v1026
  %v1041 = vpack.c.bf16 %v1029, %v1028
  %v1042 = vpack.c.bf16 %v1031, %v1030
  %v1043 = vpack.c.bf16 %v1033, %v1032
  %v1044 = vpack.c.bf16 %v1035, %v1034
  %v1045 = vpack.c.bf16 %v1037, %v1036
  %1046 = vmatprep.subr.bf16.mxu0 0
  %1047 = vmatpush1.bf16.msra.mxu0 %v1038
  %1048 = vmatprep.subr.bf16.mxu0 0
  %1049 = vmatpush1.bf16.msra.mxu0 %v1039
  %1050 = vmatprep.subr.bf16.mxu0 0
  %1051 = vmatpush1.bf16.msra.mxu0 %v1040
  %1052 = vmatprep.subr.bf16.mxu0 0
  %1053 = vmatpush1.bf16.msra.mxu0 %v1041
  %1054 = vmatprep.subr.bf16.mxu0 0
  %1055 = vmatpush1.bf16.msra.mxu0 %v1042
  %1056 = vmatprep.subr.bf16.mxu0 0
  %1057 = vmatpush1.bf16.msra.mxu0 %v1043
  %1058 = vmatprep.subr.bf16.mxu0 0
  %1059 = vmatpush1.bf16.msra.mxu0 %v1044
  %1060 = vmatprep.subr.bf16.mxu0 0
  %1061 = vmatpush1.bf16.msra.mxu0 %v1045
  %1062 = vmatprep.subr.bf16.mxu0 0
  %1063 = vmatpush1.bf16.msra.mxu0 0
  %1064 = vmatprep.subr.bf16.mxu0 0
  %1065 = vmatpush1.bf16.msra.mxu0 0
  %1066 = vmatprep.subr.bf16.mxu0 0
  %1067 = vmatpush1.bf16.msra.mxu0 0
  %1068 = vmatprep.subr.bf16.mxu0 0
  %1069 = vmatpush1.bf16.msra.mxu0 0
  %1070 = vmatprep.subr.bf16.mxu0 0
  %1071 = vmatpush1.bf16.msra.mxu0 0
  %1072 = vmatprep.subr.bf16.mxu0 0
  %1073 = vmatpush1.bf16.msra.mxu0 0
  %1074 = vmatprep.subr.bf16.mxu0 0
  %1075 = vmatpush1.bf16.msra.mxu0 0
  %1076 = vmatprep.subr.bf16.mxu0 0
  %1077 = vmatpush1.bf16.msra.mxu0 0
  %1078 = vmatprep.mubr.bf16.mxu0 0
  %1079 = vmatmul.mubr.bf16.gmra.mrb[0].mxu0 %v290
  %v1080 = vpop.f32.mrb[0].mxu0
  %v1081 = vadd.f32 %v1022, %v1080
  %v1082 = vpop.f32.mrb[0].mxu0
  %v1083 = vpop.f32.mrb[0].mxu0
  %v1084 = vadd.f32 %v1023, %v1083
  %v1085 = vpop.f32.mrb[0].mxu0
  %1086 = vmatprep.mubr.bf16.mxu0 0
  %1087 = vmatmul.mubr.bf16.gmra.mrb[0].mxu0 %v291
  %v1088 = vpop.f32.mrb[0].mxu0
  %v1089 = vadd.f32 %v1024, %v1088
  %v1090 = vpop.f32.mrb[0].mxu0
  %v1091 = vpop.f32.mrb[0].mxu0
  %v1092 = vadd.f32 %v1025, %v1091
  %v1093 = vpop.f32.mrb[0].mxu0
  %1094 = vmatprep.mubr.bf16.mxu0 0
  %1095 = vmatmul.mubr.bf16.gmra.mrb[0].mxu0 %v292
  %v1096 = vpop.f32.mrb[0].mxu0
  %v1097 = vadd.f32 %v1026, %v1096
  %v1098 = vpop.f32.mrb[0].mxu0
  %v1099 = vpop.f32.mrb[0].mxu0
  %v1100 = vadd.f32 %v1027, %v1099
  %v1101 = vpop.f32.mrb[0].mxu0
  %1102 = vmatprep.mubr.bf16.mxu0 0
  %1103 = vmatmul.mubr.bf16.gmra.mrb[0].mxu0 %v293
  %v1104 = vpop.f32.mrb[0].mxu0
  %v1105 = vadd.f32 %v1028, %v1104
  %v1106 = vpop.f32.mrb[0].mxu0
  %v1107 = vpop.f32.mrb[0].mxu0
  %v1108 = vadd.f32 %v1029, %v1107
  %v1109 = vpop.f32.mrb[0].mxu0
  %1110 = vmatprep.mubr.bf16.mxu0 0
  %1111 = vmatmul.mubr.bf16.gmra.mrb[0].mxu0 %v294
  %v1112 = vpop.f32.mrb[0].mxu0
  %v1113 = vadd.f32 %v1030, %v1112
  %v1114 = vpop.f32.mrb[0].mxu0
  %v1115 = vpop.f32.mrb[0].mxu0
  %v1116 = vadd.f32 %v1031, %v1115
  %v1117 = vpop.f32.mrb[0].mxu0
  %1118 = vmatprep.mubr.bf16.mxu0 0
  %1119 = vmatmul.mubr.bf16.gmra.mrb[0].mxu0 %v295
  %v1120 = vpop.f32.mrb[0].mxu0
  %v1121 = vadd.f32 %v1032, %v1120
  %v1122 = vpop.f32.mrb[0].mxu0
  %v1123 = vpop.f32.mrb[0].mxu0
  %v1124 = vadd.f32 %v1033, %v1123
  %v1125 = vpop.f32.mrb[0].mxu0
  %1126 = vmatprep.mubr.bf16.mxu0 0
  %1127 = vmatmul.mubr.bf16.gmra.mrb[0].mxu0 %v296
  %v1128 = vpop.f32.mrb[0].mxu0
  %v1129 = vadd.f32 %v1034, %v1128
  %v1130 = vpop.f32.mrb[0].mxu0
  %v1131 = vpop.f32.mrb[0].mxu0
  %v1132 = vadd.f32 %v1035, %v1131
  %v1133 = vpop.f32.mrb[0].mxu0
  %1134 = vmatprep.mubr.bf16.mxu0 0
  %1135 = vmatmul.mubr.bf16.gmra.mrb[0].mxu0 %v297
  %v1136 = vpop.f32.mrb[0].mxu0
  %v1137 = vadd.f32 %v1036, %v1136
  %v1138 = vpop.f32.mrb[0].mxu0
  %v1139 = vpop.f32.mrb[0].mxu0
  %v1140 = vadd.f32 %v1037, %v1139
  %v1141 = vpop.f32.mrb[0].mxu0
  %1142 = vdwg.mxu0
  %v1143 = vmul.f32 %v394, %v1081
  %v1144 = vmul.f32 %v395, %v1084
  %v1145 = vmul.f32 %v396, %v1089
  %v1146 = vmul.f32 %v397, %v1092
  %v1147 = vmul.f32 %v398, %v1097
  %v1148 = vmul.f32 %v399, %v1100
  %v1149 = vmul.f32 %v400, %v1105
  %v1150 = vmul.f32 %v401, %v1108
  %v1151 = vmul.f32 %v402, %v1113
  %v1152 = vmul.f32 %v403, %v1116
  %v1153 = vmul.f32 %v404, %v1121
  %v1154 = vmul.f32 %v405, %v1124
  %v1155 = vmul.f32 %v406, %v1129
  %v1156 = vmul.f32 %v407, %v1132
  %v1157 = vmul.f32 %v408, %v1137
  %v1158 = vmul.f32 %v409, %v1140
  %v1159 = vadd.f32 %v1006, %v1143
  %v1160 = vadd.f32 %v1007, %v1144
  %v1161 = vadd.f32 %v1008, %v1145
  %v1162 = vadd.f32 %v1009, %v1146
  %v1163 = vadd.f32 %v1010, %v1147
  %v1164 = vadd.f32 %v1011, %v1148
  %v1165 = vadd.f32 %v1012, %v1149
  %v1166 = vadd.f32 %v1013, %v1150
  %v1167 = vadd.f32 %v1014, %v1151
  %v1168 = vadd.f32 %v1015, %v1152
  %v1169 = vadd.f32 %v1016, %v1153
  %v1170 = vadd.f32 %v1017, %v1154
  %v1171 = vadd.f32 %v1018, %v1155
  %v1172 = vadd.f32 %v1019, %v1156
  %v1173 = vadd.f32 %v1020, %v1157
  %v1174 = vadd.f32 %v1021, %v1158
  %v1175 = vmul.f32 %v208, 0.1
  %v1176 = vmul.f32 %v213, 0.1
  %v1177 = vmul.f32 %v218, 0.1
  %v1178 = vmul.f32 %v223, 0.1
  %v1179 = vmul.f32 %v228, 0.1
  %v1180 = vmul.f32 %v233, 0.1
  %v1181 = vmul.f32 %v238, 0.1
  %v1182 = vmul.f32 %v243, 0.1
  %v1183 = vmul.f32 %v248, 0.1
  %v1184 = vmul.f32 %v253, 0.1
  %v1185 = vmul.f32 %v258, 0.1
  %v1186 = vmul.f32 %v263, 0.1
  %v1187 = vmul.f32 %v268, 0.1
  %v1188 = vmul.f32 %v273, 0.1
  %v1189 = vmul.f32 %v278, 0.1
  %v1190 = vmul.f32 %v283, 0.1
  %v1191 = vmul.f32 %v1159, 0.18
  %v1192 = vmul.f32 %v1160, 0.18
  %v1193 = vmul.f32 %v1161, 0.18
  %v1194 = vmul.f32 %v1162, 0.18
  %v1195 = vmul.f32 %v1163, 0.18
  %v1196 = vmul.f32 %v1164, 0.18
  %v1197 = vmul.f32 %v1165, 0.18
  %v1198 = vmul.f32 %v1166, 0.18
  %v1199 = vmul.f32 %v1167, 0.18
  %v1200 = vmul.f32 %v1168, 0.18
  %v1201 = vmul.f32 %v1169, 0.18
  %v1202 = vmul.f32 %v1170, 0.18
  %v1203 = vmul.f32 %v1171, 0.18
  %v1204 = vmul.f32 %v1172, 0.18
  %v1205 = vmul.f32 %v1173, 0.18
  %v1206 = vmul.f32 %v1174, 0.18
  %v1207 = vadd.f32 %v1175, %v1191
  %v1208 = vadd.f32 %v1176, %v1192
  %v1209 = vadd.f32 %v1177, %v1193
  %v1210 = vadd.f32 %v1178, %v1194
  %v1211 = vadd.f32 %v1179, %v1195
  %v1212 = vadd.f32 %v1180, %v1196
  %v1213 = vadd.f32 %v1181, %v1197
  %v1214 = vadd.f32 %v1182, %v1198
  %v1215 = vadd.f32 %v1183, %v1199
  %v1216 = vadd.f32 %v1184, %v1200
  %v1217 = vadd.f32 %v1185, %v1201
  %v1218 = vadd.f32 %v1186, %v1202
  %v1219 = vadd.f32 %v1187, %v1203
  %v1220 = vadd.f32 %v1188, %v1204
  %v1221 = vadd.f32 %v1189, %v1205
  %v1222 = vadd.f32 %v1190, %v1206
  %v1223 = vld [vmem:[%s3] sm:$0x1]
  %v1225 = vlaneseq
  %v1226 = vshrl.u32 %v1225, 7
  %v1227 = vsub.s32 0, %v1226
  %v1228 = vrot.slane %v1223, %v1227
  %v1230 = vadd.f32 %v1207, %v1228
  %v1231 = vadd.f32 %v1208, %v1228
  %v1232 = vadd.f32 %v1209, %v1228
  %v1233 = vadd.f32 %v1210, %v1228
  %v1234 = vadd.f32 %v1211, %v1228
  %v1235 = vadd.f32 %v1212, %v1228
  %v1236 = vadd.f32 %v1213, %v1228
  %v1237 = vadd.f32 %v1214, %v1228
  %v1238 = vadd.f32 %v1215, %v1228
  %v1239 = vadd.f32 %v1216, %v1228
  %v1240 = vadd.f32 %v1217, %v1228
  %v1241 = vadd.f32 %v1218, %v1228
  %v1242 = vadd.f32 %v1219, %v1228
  %v1243 = vadd.f32 %v1220, %v1228
  %v1244 = vadd.f32 %v1221, %v1228
  %v1245 = vadd.f32 %v1222, %v1228
  %1246 = vst [vmem:[%s4] sm:$0xff] %v1230
  %1247 = vst [vmem:[%s4 + $0x8] sm:$0xff] %v1231
  %1248 = vst [vmem:[%s4 + $0x10] sm:$0xff] %v1232
  %1249 = vst [vmem:[%s4 + $0x18] sm:$0xff] %v1233
  %1250 = vst [vmem:[%s4 + $0x20] sm:$0xff] %v1234
  %1251 = vst [vmem:[%s4 + $0x28] sm:$0xff] %v1235
  %1252 = vst [vmem:[%s4 + $0x30] sm:$0xff] %v1236
  %1253 = vst [vmem:[%s4 + $0x38] sm:$0xff] %v1237
  %1254 = vst [vmem:[%s4 + $0x40] sm:$0xff] %v1238
  %1255 = vst [vmem:[%s4 + $0x48] sm:$0xff] %v1239
  %1256 = vst [vmem:[%s4 + $0x50] sm:$0xff] %v1240
  %1257 = vst [vmem:[%s4 + $0x58] sm:$0xff] %v1241
  %1258 = vst [vmem:[%s4 + $0x60] sm:$0xff] %v1242
  %1259 = vst [vmem:[%s4 + $0x68] sm:$0xff] %v1243
  %1260 = vst [vmem:[%s4 + $0x70] sm:$0xff] %v1244
  %1261 = vst [vmem:[%s4 + $0x78] sm:$0xff] %v1245
  // Predicated region
  $region48: #{ssg_conv.1} parent=0 // pred_check
    _
  $region49: #{ssg_conv.1} parent=0 // pred_check_branch
    %1263 = sbr.rel (0) target = $region51
  $region50: #{ssg_conv.1} parent=0 // pred_region
    _
  $region51: #{ssg_conv.1} parent=0 // pred_fallthru
    _
  // Predicated region
  $region52: #{ssg_conv.1} parent=0 // pred_check
    _
  $region53: #{ssg_conv.1} parent=0 // pred_check_branch
    %1265 = sbr.rel (0) target = $region55
  $region54: #{ssg_conv.1} parent=0 // pred_region
    _
  $region55: #{ssg_conv.1} parent=0 // pred_fallthru
    _
  %1266 = vsyncmov [#allocation3]
  %s1267 = vpop.sfrf %1266
  %p1268 = scmp.eq.s32.totalorder %s1267, 0
  %p1269 = pneg %p1268
  %1271 = shalt.err (%p1269)

</llo_original>
